<compile_context>
chip_gen: v5e
topology: v5e:2x2
jax: 0.10.0
libtpu: 0.0.40
codegen_flags: <defaults>
</compile_context>

<pallas_src>
import jax
import jax.numpy as jnp
from jax.experimental import pallas as pl
from jax.experimental.pallas import tpu as pltpu


def _conv_gemm_kernel(w_ref, cols_ref, b_ref, o_ref):
    """o = w @ cols + b  --  a single lane-dense GEMM.

    w_ref:    (Cout, K)       bf16  (K = KH*KW*Cin = 36)
    cols_ref: (K, N*H*W)      bf16  im2col'd activations (columns lane-dense)
    b_ref:    (Cout, 1)       f32   bias (broadcast along lanes)
    o_ref:    (Cout, N*H*W)   f32   lane-dense output (512 = 4 * 128 lanes)
    """
    acc = jnp.dot(w_ref[...], cols_ref[...],
                  preferred_element_type=jnp.float32)
    o_ref[...] = (acc + b_ref[...]).astype(o_ref.dtype)


@jax.jit
def conv2d_3x3_same_pallas(x_nchw, weight, bias):
    """x_nchw: (N, Cin, H, W); weight: (Cout, Cin, 3, 3); bias: (Cout,)."""
    N, Cin, H, W = x_nchw.shape
    Cout, _, KH, KW = weight.shape
    NHW = N * H * W
    Kdim = KH * KW * Cin

    # im2col in the *transposed* layout so the kernel output is lane-dense:
    #   cols[(kh*KW+kw)*Cin + c, n*H*W + h*W + w] = x_pad[n, c, h+kh, w+kw]
    x_pad = jnp.pad(x_nchw, ((0, 0), (0, 0), (1, 1), (1, 1)))
    taps = [x_pad[:, :, kh:kh + H, kw:kw + W]              # each (N, Cin, H, W)
            for kh in range(KH) for kw in range(KW)]
    cols = jnp.stack(taps, axis=0)                         # (KH*KW, N, Cin, H, W)
    cols = cols.transpose(0, 2, 1, 3, 4).reshape(Kdim, NHW)

    # Weight (Cout, Cin, KH, KW) -> (Cout, (kh, kw, c)) matching cols' K order.
    w_mat = jnp.transpose(weight, (0, 2, 3, 1)).reshape(Cout, Kdim)

    # bf16 MXU inputs; accumulation stays f32 inside the kernel.
    cols_bf = cols.astype(jnp.bfloat16)
    w_bf = w_mat.astype(jnp.bfloat16)
    b_col = bias.reshape(Cout, 1).astype(jnp.float32)

    out_t = pl.pallas_call(
        _conv_gemm_kernel,
        out_shape=jax.ShapeDtypeStruct((Cout, NHW), jnp.float32),
        grid_spec=pltpu.PrefetchScalarGridSpec(
            num_scalar_prefetch=0,
            grid=(1,),
            in_specs=[
                pl.BlockSpec((Cout, Kdim), lambda i: (0, 0)),
                pl.BlockSpec((Kdim, NHW), lambda i: (0, 0)),
                pl.BlockSpec((Cout, 1), lambda i: (0, 0)),
            ],
            out_specs=pl.BlockSpec((Cout, NHW), lambda i: (0, 0)),
        ),
        compiler_params=pltpu.CompilerParams(
            dimension_semantics=("arbitrary",)),
    )(w_bf, cols_bf, b_col)

    # (Cout, N*H*W) -> (N, Cout, H, W) to match the PyTorch module's NCHW output.
    return jnp.transpose(out_t.reshape(Cout, N, H, W), (1, 0, 2, 3))


def gpu_analyze_module_forward(name, x_nchw, weight, bias):
    """Pallas/JAX equivalent of GPUAnalyzeModule.forward."""
    # TODO(synk): torch.cuda.memory_allocated() / global total_gpu_usage has no
    # Pallas/TPU equivalent; the wrapped module's compute is reproduced and the
    # profiling print is emitted with a placeholder value.
    outputs = conv2d_3x3_same_pallas(x_nchw, weight, bias)
    gpu_usage = 0.0
    print('{}:\t{:.2f}MB'.format(name.rjust(30), gpu_usage))
    return outputs


if __name__ == "__main__":
    key = jax.random.PRNGKey(0)
    kx, kw, kb = jax.random.split(key, 3)

    N, Cin, H, W = 2, 4, 16, 16
    Cout, K = 8, 3

    x = jax.random.normal(kx, (N, Cin, H, W), dtype=jnp.float32)
    # Deterministic parameter init (Conv2d(4, 8, 3, padding=1) shapes).
    weight = jax.random.normal(kw, (Cout, Cin, K, K), dtype=jnp.float32) * 0.1
    bias = jax.random.normal(kb, (Cout,), dtype=jnp.float32) * 0.1

    out = gpu_analyze_module_forward("conv3x3", x, weight, bias)
    out = jax.block_until_ready(out)

    # Correctness check against XLA's reference convolution (f32).
    ref = jax.lax.conv_general_dilated(
        x, weight, window_strides=(1, 1), padding="SAME",
        dimension_numbers=("NCHW", "OIHW", "NCHW"),
    ) + bias.reshape(1, Cout, 1, 1)
    assert out.shape == (N, Cout, H, W)
    # Tolerance loosened for bf16 MXU inputs (f32 accumulation).
    assert jnp.allclose(out, ref, atol=5e-2, rtol=5e-2), "mismatch vs reference conv"

    print("KERNEL_OK")
</pallas_src>

<mosaic_0001>
module attributes {stable_mosaic.version = 11 : i64} {
  func.func @_conv_gemm_kernel(%arg0: i32, %arg1: memref<8x36xbf16, #tpu.memory_space<vmem>>, %arg2: memref<36x512xbf16, #tpu.memory_space<vmem>>, %arg3: memref<8x1xf32, #tpu.memory_space<vmem>>, %arg4: memref<8x512xf32, #tpu.memory_space<vmem>>) attributes {dimension_semantics = [#tpu.dimension_semantics<arbitrary>], iteration_bounds = array<i64: 1>, scalar_prefetch = 0 : i64, scratch_operands = 0 : i64, tpu.core_type = #tpu.core_type<tc>, window_params = [{pipeline_mode = #tpu.pipeline_mode<synchronous>, transform_indices = @transform_0, window_bounds = array<i64: 8, 36>}, {pipeline_mode = #tpu.pipeline_mode<synchronous>, transform_indices = @transform_1, window_bounds = array<i64: 36, 512>}, {pipeline_mode = #tpu.pipeline_mode<synchronous>, transform_indices = @transform_2, window_bounds = array<i64: 8, 1>}, {pipeline_mode = #tpu.pipeline_mode<synchronous>, transform_indices = @transform_3, window_bounds = array<i64: 8, 512>}]} {
    %c0 = arith.constant 0 : index
    %c0_0 = arith.constant 0 : index
    %0 = vector.load %arg1[%c0, %c0_0] : memref<8x36xbf16, #tpu.memory_space<vmem>>, vector<8x36xbf16>
    %c0_1 = arith.constant 0 : index
    %c0_2 = arith.constant 0 : index
    %1 = vector.load %arg2[%c0_1, %c0_2] : memref<36x512xbf16, #tpu.memory_space<vmem>>, vector<36x512xbf16>
    %cst = arith.constant dense<0.000000e+00> : vector<8x512xf32>
    %2 = tpu.matmul %0, %1, %cst {dimension_numbers = #tpu.dot_dimension_numbers<[1], [0], [0], [1], [0, 0, 1, 1], [], []>} : vector<8x36xbf16>, vector<36x512xbf16>, vector<8x512xf32> -> vector<8x512xf32>
    %c0_3 = arith.constant 0 : index
    %c0_4 = arith.constant 0 : index
    %3 = vector.load %arg3[%c0_3, %c0_4] : memref<8x1xf32, #tpu.memory_space<vmem>>, vector<8x1xf32>
    %4 = vector.broadcast %3 : vector<8x1xf32> to vector<8x512xf32>
    %5 = arith.addf %2, %4 : vector<8x512xf32>
    %c0_5 = arith.constant 0 : index
    %c0_6 = arith.constant 0 : index
    %6 = vector.load %arg4[%c0_5, %c0_6] : memref<8x512xf32, #tpu.memory_space<vmem>>, vector<8x512xf32>
    tpu.vector_store %arg4[%c0_5, %c0_6], %5 {strides = array<i32>} : memref<8x512xf32, #tpu.memory_space<vmem>>, vector<8x512xf32>,
    return
  }
  func.func @transform_0(%arg0: i32) -> (i32, i32) {
    %c0_i32 = arith.constant 0 : i32
    %c0_i32_0 = arith.constant 0 : i32
    %c0_i32_1 = arith.constant 0 : i32
    return %c0_i32, %c0_i32_0 : i32, i32
  }
  func.func @transform_1(%arg0: i32) -> (i32, i32) {
    %c0_i32 = arith.constant 0 : i32
    %c0_i32_0 = arith.constant 0 : i32
    %c0_i32_1 = arith.constant 0 : i32
    return %c0_i32, %c0_i32_0 : i32, i32
  }
  func.func @transform_2(%arg0: i32) -> (i32, i32) {
    %c0_i32 = arith.constant 0 : i32
    %c0_i32_0 = arith.constant 0 : i32
    %c0_i32_1 = arith.constant 0 : i32
    return %c0_i32, %c0_i32_0 : i32, i32
  }
  func.func @transform_3(%arg0: i32) -> (i32, i32) {
    %c0_i32 = arith.constant 0 : i32
    %c0_i32_0 = arith.constant 0 : i32
    %c0_i32_1 = arith.constant 0 : i32
    return %c0_i32, %c0_i32_0 : i32, i32
  }
}

</mosaic_0001>

<llo_original>
// kernel: conv2d_3x3_same_pallas.1
$region0: #{conv2d_3x3_same_pallas.1}
  #allocation0 [shape = 'u32[]', space=smem, size = 0x4, offset = 0x4, fixed_abs, tag = 'smem constant byte address 0x4 - core index']
  #allocation1 [shape = 'u32[72,128]{1,0:T(1,128)}', space=vmem, size = 0x9000, scoped, tag = 'internal scratch']
  %s0 = inlined_call_operand.vmem [shape: bf16[8,36], index: 0, kind: input, shape index: {}]
  %s1 = inlined_call_operand.vmem [shape: bf16[36,512], index: 1, kind: input, shape index: {}]
  %s2 = inlined_call_operand.vmem [shape: f32[8,1], index: 2, kind: input, shape index: {}]
  %s3 = inlined_call_operand.vmem [shape: f32[8,512], index: 3, kind: output, shape index: {}]
  %s4 = sld [smem:[#allocation0]]
  $region22: #{conv2d_3x3_same_pallas.1} parent=0
    _
  %s6 = ssub.s32 1, %s4
  %s7 = scalar_select 0, %s6, %s4
  // Predicated region
  $region2: #{conv2d_3x3_same_pallas.1} parent=0 // pred_check
    _
  $region3: #{conv2d_3x3_same_pallas.1} parent=0 // pred_check_branch
    %9 = sbr.rel (0) target = $region5
  $region4: #{conv2d_3x3_same_pallas.1} parent=0 // pred_region
    _
  $region5: #{conv2d_3x3_same_pallas.1} parent=0 // pred_fallthru
    _
  // Predicated region
  $region6: #{conv2d_3x3_same_pallas.1} parent=0 // pred_check
    _
  $region7: #{conv2d_3x3_same_pallas.1} parent=0 // pred_check_branch
    %11 = sbr.rel (0) target = $region9
  $region8: #{conv2d_3x3_same_pallas.1} parent=0 // pred_region
    _
  $region9: #{conv2d_3x3_same_pallas.1} parent=0 // pred_fallthru
    _
  // Predicated region
  $region10: #{conv2d_3x3_same_pallas.1} parent=0 // pred_check
    _
  $region11: #{conv2d_3x3_same_pallas.1} parent=0 // pred_check_branch
    %13 = sbr.rel (0) target = $region13
  $region12: #{conv2d_3x3_same_pallas.1} parent=0 // pred_region
    _
  $region13: #{conv2d_3x3_same_pallas.1} parent=0 // pred_fallthru
    _
  %v15 = vld [vmem:[%s0] sm:$0xf]
  %v16 = vld [vmem:[%s1] sm:$0xff]
  %v17 = vld [vmem:[%s1 + $0x8] sm:$0xff]
  %v18 = vld [vmem:[%s1 + $0x10] sm:$0xff]
  %v19 = vld [vmem:[%s1 + $0x18] sm:$0xff]
  %v20 = vld [vmem:[%s1 + $0x20] sm:$0xff]
  %v21 = vld [vmem:[%s1 + $0x28] sm:$0xff]
  %v22 = vld [vmem:[%s1 + $0x30] sm:$0xff]
  %v23 = vld [vmem:[%s1 + $0x38] sm:$0xff]
  %v24 = vld [vmem:[%s1 + $0x40] sm:$0x33]
  %v25 = vld [vmem:[%s1 + $0x48] sm:$0x33]
  %v26 = vld [vmem:[%s2] sm:$0xff]
  %28 = vset.pattern.permute.xlu0 0
  %29 = vperm.xlu0 %28, %v26
  %v30 = vpop.permute.xlu0 %29
  %v42 = vunpack.c.l.b16 %v16
  %v43 = vunpack.c.h.b16 %v16
  %v44 = vunpack.c.l.b16 %v17
  %v45 = vunpack.c.h.b16 %v17
  %v46 = vunpack.c.l.b16 %v18
  %v47 = vunpack.c.h.b16 %v18
  %v48 = vunpack.c.l.b16 %v19
  %v49 = vunpack.c.h.b16 %v19
  %v50 = vunpack.c.l.b16 %v20
  %v51 = vunpack.c.h.b16 %v20
  %v52 = vunpack.c.l.b16 %v21
  %v53 = vunpack.c.h.b16 %v21
  %v54 = vunpack.c.l.b16 %v22
  %v55 = vunpack.c.h.b16 %v22
  %v56 = vunpack.c.l.b16 %v23
  %v57 = vunpack.c.h.b16 %v23
  %v58 = vunpack.c.l.b16 %v24
  %v59 = vunpack.c.h.b16 %v24
  %v60 = vunpack.c.l.b16 %v25
  %v61 = vunpack.c.h.b16 %v25
  %v62 = vpack.c.b16 %v46, %v42
  %v63 = vpack.c.b16 %v47, %v43
  %v64 = vpack.c.b16 %v48, %v44
  %v65 = vpack.c.b16 %v49, %v45
  %v66 = vpack.c.b16 %v54, %v50
  %v67 = vpack.c.b16 %v55, %v51
  %v68 = vpack.c.b16 %v56, %v52
  %v69 = vpack.c.b16 %v57, %v53
  %v70 = vpack.c.b16 %v58, %v58
  %v71 = vpack.c.b16 %v59, %v59
  %v72 = vpack.c.b16 %v60, %v60
  %v73 = vpack.c.b16 %v61, %v61
  %vm82 = vcmask 293888
  %v84 = vsel %vm82, %v15, 0
  %vm86 = vcmask 1041408
  %v88 = vsel %vm86, %v70, 0
  %v91 = vsel %vm86, %v71, 0
  %v94 = vsel %vm86, %v72, 0
  %v97 = vsel %vm86, %v73, 0
  %99 = vmatpush.bf16.msra.mxu0 0
  %100 = vmatpush.bf16.msra.mxu0 0
  %101 = vmatpush.bf16.msra.mxu0 0
  %102 = vmatpush.bf16.msra.mxu0 0
  %103 = vmatpush.bf16.msra.mxu0 0
  %104 = vmatpush.bf16.msra.mxu0 %v88
  %105 = vmatpush.bf16.msra.mxu0 %v66
  %106 = vmatpush.bf16.msra.mxu0 %v62
  %107 = vmatmul.bf16.gmra.mxu0 %v84
  %v108 = vpop.f32.mrf.mxu0
  %v109 = vadd.f32 %v30, %v108
  %v110 = vpop.f32.mrf.mxu0
  %111 = vdwg.mxu0
  %112 = vmatpush.bf16.msra.mxu0 0
  %113 = vmatpush.bf16.msra.mxu0 0
  %114 = vmatpush.bf16.msra.mxu0 0
  %115 = vmatpush.bf16.msra.mxu0 0
  %116 = vmatpush.bf16.msra.mxu0 0
  %117 = vmatpush.bf16.msra.mxu0 %v91
  %118 = vmatpush.bf16.msra.mxu0 %v67
  %119 = vmatpush.bf16.msra.mxu0 %v63
  %120 = vmatmul.bf16.gmra.mxu0 %v84
  %v121 = vpop.f32.mrf.mxu0
  %v122 = vadd.f32 %v30, %v121
  %v123 = vpop.f32.mrf.mxu0
  %124 = vdwg.mxu0
  %125 = vmatpush.bf16.msra.mxu0 0
  %126 = vmatpush.bf16.msra.mxu0 0
  %127 = vmatpush.bf16.msra.mxu0 0
  %128 = vmatpush.bf16.msra.mxu0 0
  %129 = vmatpush.bf16.msra.mxu0 0
  %130 = vmatpush.bf16.msra.mxu0 %v94
  %131 = vmatpush.bf16.msra.mxu0 %v68
  %132 = vmatpush.bf16.msra.mxu0 %v64
  %133 = vmatmul.bf16.gmra.mxu0 %v84
  %v134 = vpop.f32.mrf.mxu0
  %v135 = vadd.f32 %v30, %v134
  %v136 = vpop.f32.mrf.mxu0
  %137 = vdwg.mxu0
  %138 = vmatpush.bf16.msra.mxu0 0
  %139 = vmatpush.bf16.msra.mxu0 0
  %140 = vmatpush.bf16.msra.mxu0 0
  %141 = vmatpush.bf16.msra.mxu0 0
  %142 = vmatpush.bf16.msra.mxu0 0
  %143 = vmatpush.bf16.msra.mxu0 %v97
  %144 = vmatpush.bf16.msra.mxu0 %v69
  %145 = vmatpush.bf16.msra.mxu0 %v65
  %146 = vmatmul.bf16.gmra.mxu0 %v84
  %v147 = vpop.f32.mrf.mxu0
  %v148 = vadd.f32 %v30, %v147
  %v149 = vpop.f32.mrf.mxu0
  %150 = vdwg.mxu0
  %151 = vst [vmem:[%s3] sm:$0xff] %v109
  %152 = vst [vmem:[%s3 + $0x8] sm:$0xff] %v122
  %153 = vst [vmem:[%s3 + $0x10] sm:$0xff] %v135
  %154 = vst [vmem:[%s3 + $0x18] sm:$0xff] %v148
  // Predicated region
  $region14: #{conv2d_3x3_same_pallas.1} parent=0 // pred_check
    _
  $region15: #{conv2d_3x3_same_pallas.1} parent=0 // pred_check_branch
    %156 = sbr.rel (0) target = $region17
  $region16: #{conv2d_3x3_same_pallas.1} parent=0 // pred_region
    _
  $region17: #{conv2d_3x3_same_pallas.1} parent=0 // pred_fallthru
    _
  // Predicated region
  $region18: #{conv2d_3x3_same_pallas.1} parent=0 // pred_check
    _
  $region19: #{conv2d_3x3_same_pallas.1} parent=0 // pred_check_branch
    %158 = sbr.rel (0) target = $region21
  $region20: #{conv2d_3x3_same_pallas.1} parent=0 // pred_region
    _
  $region21: #{conv2d_3x3_same_pallas.1} parent=0 // pred_fallthru
    _

</llo_original>
